<compile_context>
chip_gen: v5e
topology: v5e:2x2
jax: 0.10.0
libtpu: 0.0.40
codegen_flags: <defaults>
</compile_context>

<pallas_src>
import numpy as np

import jax
import jax.numpy as jnp
from jax.experimental import pallas as pl
from jax.experimental.pallas import tpu as pltpu


def _round_up(v: int, m: int) -> int:
    return ((v + m - 1) // m) * m


def _pick_tile(dim: int, cap: int, mult: int) -> int:
    """Largest multiple-of-`mult` tile <= cap that minimizes zero-padding of `dim`."""
    best_t, best_waste = mult, None
    t = mult
    while t <= cap:
        waste = _round_up(dim, t) - dim
        if best_waste is None or waste < best_waste or (waste == best_waste and t > best_t):
            best_t, best_waste = t, waste
        t += mult
    return best_t


# ---------------------------------------------------------------------------
# Kernel 1: xa = x @ lora_A.  Computed ONCE per M-tile (not per N-tile) -- this
# is the "hoist x@A out of the inner loop" fix from the review.
# ---------------------------------------------------------------------------
def xa_kernel(x_ref, a_ref, xa_ref):
    """x_ref: (tm, tk) bf16; a_ref: (tk, rp) bf16; xa_ref: (tm, rp) f32 output.

    The output block index is constant across k, so the f32 output tile itself
    is the VMEM-resident accumulator (no scratch needed)."""
    k = pl.program_id(1)

    @pl.when(k == 0)
    def _init():
        xa_ref[...] = jnp.zeros_like(xa_ref)

    xa_ref[...] += jnp.dot(x_ref[...], a_ref[...], preferred_element_type=jnp.float32)


# ---------------------------------------------------------------------------
# Kernel 2: y = x @ W_t + bias + xa @ B over a (M-tiles, N-tiles, K-tiles) grid.
# ---------------------------------------------------------------------------
def lora_kernel(x_ref, w_ref, xa_ref, b_ref, bias_ref, o_ref, *maybe_acc):
    """x_ref:(tm,tk) bf16; w_ref:(tk,tn) bf16 pre-transposed (in,out);
    xa_ref:(tm,rp) f32; b_ref:(rp,tn) bf16; bias_ref:(1,tn) f32; o_ref:(tm,tn).

    If o_ref is f32 there is no scratch and the output tile (block index
    constant across k -> VMEM-resident) is the accumulator.  For bf16 outputs
    a single f32 VMEM scratch is passed as the trailing arg."""
    acc_ref = maybe_acc[0] if maybe_acc else o_ref
    k = pl.program_id(2)

    @pl.when(k == 0)
    def _init():
        acc_ref[...] = jnp.zeros_like(acc_ref)

    acc_ref[...] += jnp.dot(x_ref[...], w_ref[...], preferred_element_type=jnp.float32)

    @pl.when(k == pl.num_programs(2) - 1)
    def _finalize():
        # Epilogue (once per output tile): low-rank update + bias, single cast-store.
        lora = jnp.dot(xa_ref[...].astype(b_ref.dtype), b_ref[...],
                       preferred_element_type=jnp.float32)
        o_ref[...] = (acc_ref[...] + bias_ref[...] + lora).astype(o_ref.dtype)


def _weight_spec(tk, tn):
    index_map = lambda i, j, k: (k, j)
    try:
        # 3-deep weight stream: hides HBM latency jitter in the weight-streaming
        # (small-M) regime; costs only one extra (tk, tn) bf16 tile of VMEM.
        return pl.BlockSpec((tk, tn), index_map, pipeline_mode=pl.Buffered(3))
    except (TypeError, AttributeError):
        return pl.BlockSpec((tk, tn), index_map)


def prepare_lora_params(w, bias, lora_a, lora_b, *, tn=None, tk=None):
    """One-time parameter prep (do NOT call per forward pass).

    Transposes the nn.Linear weight to (in, out), casts to bf16 and zero-pads
    to tile multiples.  Rank is padded only to the next sublane-friendly size.

    w: (N, K) PyTorch (out, in); bias: (N,); lora_a: (K, r); lora_b: (r, N).
    """
    N, K = w.shape
    r = lora_a.shape[1]
    assert lora_a.shape[0] == K and lora_b.shape == (r, N)

    tn = tn or _pick_tile(N, 512, 128)
    tk = tk or _pick_tile(K, 512, 128)
    Np, Kp = _round_up(N, tn), _round_up(K, tk)
    rp = _round_up(max(r, 1), 16)   # sublane-friendly, NOT 128 (no 32x DMA blowup)

    bf16 = jnp.bfloat16
    w_t = jnp.zeros((Kp, Np), bf16).at[:K, :N].set(jnp.transpose(w).astype(bf16))
    a_p = jnp.zeros((Kp, rp), bf16).at[:K, :r].set(lora_a.astype(bf16))
    b_p = jnp.zeros((rp, Np), bf16).at[:r, :N].set(lora_b.astype(bf16))
    bias_p = jnp.zeros((1, Np), jnp.float32).at[:, :N].set(
        jnp.reshape(bias, (1, N)).astype(jnp.float32))

    return dict(w_t=w_t, a=a_p, b=b_p, bias=bias_p,
                N=N, K=K, r=r, rp=rp, tn=tn, tk=tk, Np=Np, Kp=Kp)


def lora_forward(x, params, *, tm=None, out_dtype=jnp.float32):
    """x: (M, K) -> (M, N) in `out_dtype`.  `params` from prepare_lora_params()."""
    M, K = x.shape
    assert K == params["K"]
    N, rp = params["N"], params["rp"]
    tn, tk, Np, Kp = params["tn"], params["tk"], params["Np"], params["Kp"]

    tm = tm or _pick_tile(M, 512, 16)   # 16-row multiple: bf16 sublane packing
    Mp = _round_up(M, tm)

    # Only the activation is padded per call; all static params were prepped once.
    x_p = jnp.zeros((Mp, Kp), jnp.bfloat16).at[:M, :K].set(x.astype(jnp.bfloat16))

    # ---- kernel 1: xa = x @ A (f32, (Mp, rp)) ------------------------------
    xa = pl.pallas_call(
        xa_kernel,
        out_shape=jax.ShapeDtypeStruct((Mp, rp), jnp.float32),
        grid_spec=pltpu.PrefetchScalarGridSpec(
            num_scalar_prefetch=0,
            grid=(Mp // tm, Kp // tk),
            in_specs=[
                pl.BlockSpec((tm, tk), lambda i, k: (i, k)),   # x
                pl.BlockSpec((tk, rp), lambda i, k: (k, 0)),   # lora_A
            ],
            out_specs=pl.BlockSpec((tm, rp), lambda i, k: (i, 0)),
        ),
        compiler_params=pltpu.CompilerParams(
            dimension_semantics=("parallel", "arbitrary")),
    )(x_p, params["a"])

    # ---- kernel 2: y = x @ W_t + bias + xa @ B -----------------------------
    use_acc_scratch = np.dtype(out_dtype) != np.dtype(jnp.float32)
    scratch_shapes = (pltpu.VMEM((tm, tn), jnp.float32),) if use_acc_scratch else ()

    out_p = pl.pallas_call(
        lora_kernel,
        out_shape=jax.ShapeDtypeStruct((Mp, Np), out_dtype),
        grid_spec=pltpu.PrefetchScalarGridSpec(
            num_scalar_prefetch=0,
            grid=(Mp // tm, Np // tn, Kp // tk),
            in_specs=[
                pl.BlockSpec((tm, tk), lambda i, j, k: (i, k)),   # x
                _weight_spec(tk, tn),                              # W_t (k, j)
                pl.BlockSpec((tm, rp), lambda i, j, k: (i, 0)),   # xa (cached per i)
                pl.BlockSpec((rp, tn), lambda i, j, k: (0, j)),   # lora_B
                pl.BlockSpec((1, tn), lambda i, j, k: (0, j)),    # bias
            ],
            out_specs=pl.BlockSpec((tm, tn), lambda i, j, k: (i, j)),
            scratch_shapes=scratch_shapes,
        ),
        compiler_params=pltpu.CompilerParams(
            dimension_semantics=("parallel", "parallel", "arbitrary"),
            # Actual need is a few MiB at 512-wide tiles; 48 MiB keeps headroom
            # even on v7x (64 MiB physical VMEM per TensorCore).
            vmem_limit_bytes=48 * 1024 * 1024,
        ),
    )(x_p, params["w_t"], xa, params["b"], params["bias"])

    return out_p[:M, :N]


if __name__ == "__main__":
    # Small, deterministic setup consistent with the module (D square, tiny rank).
    M, D, RANK = 8, 32, 4
    key = jax.random.PRNGKey(0)
    kx, kw, kb, ka, kbb = jax.random.split(key, 5)

    scale = 0.02
    x      = jax.random.normal(kx, (M, D), dtype=jnp.float32)
    w      = jax.random.normal(kw, (D, D), dtype=jnp.float32) * 0.1   # nn.Linear weight (out, in)
    bias   = jax.random.normal(kb, (D,), dtype=jnp.float32) * 0.1     # nn.Linear bias
    lora_a = jax.random.normal(ka, (D, RANK), dtype=jnp.float32) * scale
    lora_b = jax.random.normal(kbb, (RANK, D), dtype=jnp.float32) * scale

    params = prepare_lora_params(w, bias, lora_a, lora_b)   # one-time prep
    out = jax.block_until_ready(lora_forward(x, params))

    # Reference 1: same bf16-operand / f32-accumulate recipe as the kernel (tight check).
    xb, wtb = x.astype(jnp.bfloat16), w.T.astype(jnp.bfloat16)
    ab, bb = lora_a.astype(jnp.bfloat16), lora_b.astype(jnp.bfloat16)
    base = jnp.dot(xb, wtb, preferred_element_type=jnp.float32)
    xa_ref = jnp.dot(xb, ab, preferred_element_type=jnp.float32)
    lora = jnp.dot(xa_ref.astype(jnp.bfloat16), bb, preferred_element_type=jnp.float32)
    ref_bf16 = base + bias[None, :] + lora
    assert jnp.allclose(out, ref_bf16, atol=2e-3, rtol=2e-3), "mismatch vs bf16 reference"

    # Reference 2: full-f32 PyTorch semantics (loose check — inputs are bf16-cast).
    ref_f32 = x @ w.T + bias[None, :] + (x @ lora_a) @ lora_b
    assert jnp.allclose(out, ref_f32, atol=5e-2, rtol=5e-2), "mismatch vs f32 reference"

    # Optional bf16 output path (f32 accumulation kept in a VMEM scratch).
    out_bf16 = jax.block_until_ready(lora_forward(x, params, out_dtype=jnp.bfloat16))
    assert jnp.allclose(out_bf16.astype(jnp.float32), out, atol=3e-2, rtol=3e-2), \
        "mismatch vs bf16 output path"

    print("KERNEL_OK")
</pallas_src>

<mosaic_0001>
module attributes {stable_mosaic.version = 11 : i64} {
  func.func @xa_kernel(%arg0: i32, %arg1: i32, %arg2: memref<16x128xbf16, #tpu.memory_space<vmem>>, %arg3: memref<128x16xbf16, #tpu.memory_space<vmem>>, %arg4: memref<16x16xf32, #tpu.memory_space<vmem>>) attributes {dimension_semantics = [#tpu.dimension_semantics<parallel>, #tpu.dimension_semantics<arbitrary>], iteration_bounds = array<i64: 1, 1>, scalar_prefetch = 0 : i64, scratch_operands = 0 : i64, tpu.core_type = #tpu.core_type<tc>, window_params = [{transform_indices = @transform_0, window_bounds = array<i64: 16, 128>}, {transform_indices = @transform_1, window_bounds = array<i64: 128, 16>}, {transform_indices = @transform_2, window_bounds = array<i64: 16, 16>}]} {
    %c0_i32 = arith.constant 0 : i32
    %0 = arith.cmpi eq, %arg1, %c0_i32 : i32
    %1 = arith.extui %0 : i1 to i32
    %c0_i32_0 = arith.constant 0 : i32
    %2 = arith.cmpi ne, %1, %c0_i32_0 : i32
    scf.if %2 {
      %cst_8 = arith.constant 0.000000e+00 : f32
      %9 = vector.broadcast %cst_8 : f32 to vector<16x16xf32>
      %c0_9 = arith.constant 0 : index
      %c0_10 = arith.constant 0 : index
      %10 = vector.load %arg4[%c0_9, %c0_10] : memref<16x16xf32, #tpu.memory_space<vmem>>, vector<16x16xf32>
      tpu.vector_store %arg4[%c0_9, %c0_10], %9 {strides = array<i32>} : memref<16x16xf32, #tpu.memory_space<vmem>>, vector<16x16xf32>,
    } else {
    }
    %c0 = arith.constant 0 : index
    %c0_1 = arith.constant 0 : index
    %3 = vector.load %arg4[%c0, %c0_1] : memref<16x16xf32, #tpu.memory_space<vmem>>, vector<16x16xf32>
    %c0_2 = arith.constant 0 : index
    %c0_3 = arith.constant 0 : index
    %4 = vector.load %arg2[%c0_2, %c0_3] : memref<16x128xbf16, #tpu.memory_space<vmem>>, vector<16x128xbf16>
    %c0_4 = arith.constant 0 : index
    %c0_5 = arith.constant 0 : index
    %5 = vector.load %arg3[%c0_4, %c0_5] : memref<128x16xbf16, #tpu.memory_space<vmem>>, vector<128x16xbf16>
    %cst = arith.constant dense<0.000000e+00> : vector<16x16xf32>
    %6 = tpu.matmul %4, %5, %cst {dimension_numbers = #tpu.dot_dimension_numbers<[1], [0], [0], [1], [0, 0, 1, 1], [], []>} : vector<16x128xbf16>, vector<128x16xbf16>, vector<16x16xf32> -> vector<16x16xf32>
    %7 = arith.addf %3, %6 : vector<16x16xf32>
    %c0_6 = arith.constant 0 : index
    %c0_7 = arith.constant 0 : index
    %8 = vector.load %arg4[%c0_6, %c0_7] : memref<16x16xf32, #tpu.memory_space<vmem>>, vector<16x16xf32>
    tpu.vector_store %arg4[%c0_6, %c0_7], %7 {strides = array<i32>} : memref<16x16xf32, #tpu.memory_space<vmem>>, vector<16x16xf32>,
    return
  }
  func.func @transform_0(%arg0: i32, %arg1: i32) -> (i32, i32) {
    %c0_i32 = arith.constant 0 : i32
    return %arg0, %arg1 : i32, i32
  }
  func.func @transform_1(%arg0: i32, %arg1: i32) -> (i32, i32) {
    %c0_i32 = arith.constant 0 : i32
    %c0_i32_0 = arith.constant 0 : i32
    return %arg1, %c0_i32 : i32, i32
  }
  func.func @transform_2(%arg0: i32, %arg1: i32) -> (i32, i32) {
    %c0_i32 = arith.constant 0 : i32
    %c0_i32_0 = arith.constant 0 : i32
    return %arg0, %c0_i32 : i32, i32
  }
}

</mosaic_0001>

<llo_original>
// kernel: tpu_custom_call.1
$region0: #{tpu_custom_call.1}
  #allocation0 [shape = 'u32[]', space=smem, size = 0x4, offset = 0x4, fixed_abs, tag = 'smem constant byte address 0x4 - core index']
  #allocation1 [shape = 'u32[72,128]{1,0:T(1,128)}', space=vmem, size = 0x9000, scoped, tag = 'internal scratch']
  %s0 = inlined_call_operand.vmem [shape: bf16[16,128], index: 0, kind: input, shape index: {}]
  %s1 = inlined_call_operand.vmem [shape: bf16[128,16], index: 1, kind: input, shape index: {}]
  %s2 = inlined_call_operand.hbm [shape: f32[16,16], index: 2, kind: output, shape index: {}]
  %s3 = sld [smem:[#allocation0]]
  $region22: #{tpu_custom_call.1} parent=0
    _
  %s5 = ssub.s32 1, %s3
  %s6 = scalar_select 0, %s5, %s3
  $region1: #{tpu_custom_call.1} parent=0
    #allocation2 [shape = 'u8[8192]{0}', space=vmem, size = 0x2000, scoped, tag = 'output window, operand 0, single buffered']
    #allocation3 [shape = 's32[1]{0}', space=sflag, size = 0x4, scoped, tag = 'scoped memory for tpu_custom_call.1']
    %7 = vsyncpa [#allocation3], 0
    // Predicated region
    $region2: #{tpu_custom_call.1} parent=1 // pred_check
      _
    $region3: #{tpu_custom_call.1} parent=1 // pred_check_branch
      %9 = sbr.rel (0) target = $region5
    $region4: #{tpu_custom_call.1} parent=1 // pred_region
      _
    $region5: #{tpu_custom_call.1} parent=1 // pred_fallthru
      _
    // Predicated region
    $region6: #{tpu_custom_call.1} parent=1 // pred_check
      _
    $region7: #{tpu_custom_call.1} parent=1 // pred_check_branch
      %11 = sbr.rel (0) target = $region9
    $region8: #{tpu_custom_call.1} parent=1 // pred_region
      _
    $region9: #{tpu_custom_call.1} parent=1 // pred_fallthru
      _
    %p12 = scmp.eq.s32.totalorder 0, 0
    // Predicated region
    $region10: #{tpu_custom_call.1} parent=1 // pred_check
      %p13 = pneg %p12
    $region11: #{tpu_custom_call.1} parent=1 // pred_check_branch
      %15 = sbr.rel (%p13) target = $region13
    $region12: #{tpu_custom_call.1} parent=1 // pred_region
      %vm16 = vcmask 130048
      %17 = vst.msk [vmem:[#allocation2] sm:$0xff] %vm16, 0.0
      %18 = vst.msk [vmem:[#allocation2 + $0x8] sm:$0xff] %vm16, 0.0
    $region13: #{tpu_custom_call.1} parent=1 // pred_fallthru
      _
    %v19 = vld [vmem:[#allocation2] sm:$0xff]
    %v20 = vld [vmem:[#allocation2 + $0x8] sm:$0xff]
    %v21 = vld [vmem:[%s0] sm:$0xf]
    %v22 = vld [vmem:[%s0 + $0x4] sm:$0xf]
    %v23 = vld [vmem:[%s1] sm:$0xf]
    %v24 = vld [vmem:[%s1 + $0x4] sm:$0xf]
    %v25 = vld [vmem:[%s1 + $0x8] sm:$0xf]
    %v26 = vld [vmem:[%s1 + $0xc] sm:$0xf]
    %v27 = vld [vmem:[%s1 + $0x10] sm:$0xf]
    %v28 = vld [vmem:[%s1 + $0x14] sm:$0xf]
    %v29 = vld [vmem:[%s1 + $0x18] sm:$0xf]
    %v30 = vld [vmem:[%s1 + $0x1c] sm:$0xf]
    %v31 = vld [vmem:[%s1 + $0x20] sm:$0xf]
    %v32 = vld [vmem:[%s1 + $0x24] sm:$0xf]
    %v33 = vld [vmem:[%s1 + $0x28] sm:$0xf]
    %v34 = vld [vmem:[%s1 + $0x2c] sm:$0xf]
    %v35 = vld [vmem:[%s1 + $0x30] sm:$0xf]
    %v36 = vld [vmem:[%s1 + $0x34] sm:$0xf]
    %v37 = vld [vmem:[%s1 + $0x38] sm:$0xf]
    %v38 = vld [vmem:[%s1 + $0x3c] sm:$0xf]
    %v41 = vunpack.c.l.b16 %v21
    %v42 = vunpack.c.l.b16 %v22
    %v43 = vpack.c.b16 %v42, %v41
    %v61 = vunpack.c.l.b16 %v23
    %v62 = vunpack.c.l.b16 %v24
    %v63 = vunpack.c.l.b16 %v25
    %v64 = vunpack.c.l.b16 %v26
    %v65 = vunpack.c.l.b16 %v27
    %v66 = vunpack.c.l.b16 %v28
    %v67 = vunpack.c.l.b16 %v29
    %v68 = vunpack.c.l.b16 %v30
    %v69 = vunpack.c.l.b16 %v31
    %v70 = vunpack.c.l.b16 %v32
    %v71 = vunpack.c.l.b16 %v33
    %v72 = vunpack.c.l.b16 %v34
    %v73 = vunpack.c.l.b16 %v35
    %v74 = vunpack.c.l.b16 %v36
    %v75 = vunpack.c.l.b16 %v37
    %v76 = vunpack.c.l.b16 %v38
    %v77 = vpack.c.b16 %v62, %v61
    %v78 = vpack.c.b16 %v64, %v63
    %v79 = vpack.c.b16 %v66, %v65
    %v80 = vpack.c.b16 %v68, %v67
    %v81 = vpack.c.b16 %v70, %v69
    %v82 = vpack.c.b16 %v72, %v71
    %v83 = vpack.c.b16 %v74, %v73
    %v84 = vpack.c.b16 %v76, %v75
    %93 = vmatpush.bf16.msra.mxu0 %v84
    %94 = vmatpush.bf16.msra.mxu0 %v83
    %95 = vmatpush.bf16.msra.mxu0 %v82
    %96 = vmatpush.bf16.msra.mxu0 %v81
    %97 = vmatpush.bf16.msra.mxu0 %v80
    %98 = vmatpush.bf16.msra.mxu0 %v79
    %99 = vmatpush.bf16.msra.mxu0 %v78
    %100 = vmatpush.bf16.msra.mxu0 %v77
    %101 = vmatmul.bf16.gmra.mxu0 %v43
    %v102 = vpop.f32.mrf.mxu0
    %v103 = vadd.f32 0.0, %v102
    %v104 = vpop.f32.mrf.mxu0
    %v105 = vadd.f32 0.0, %v104
    %106 = vdwg.mxu0
    %v107 = vadd.f32 %v19, %v103
    %v108 = vadd.f32 %v20, %v105
    %vm109 = vcmask 130048
    %110 = vst.msk [vmem:[#allocation2] sm:$0xff] %vm109, %v107
    %111 = vst.msk [vmem:[#allocation2 + $0x8] sm:$0xff] %vm109, %v108
    // Predicated region
    $region14: #{tpu_custom_call.1} parent=1 // pred_check
      _
    $region15: #{tpu_custom_call.1} parent=1 // pred_check_branch
      %113 = sbr.rel (0) target = $region17
    $region16: #{tpu_custom_call.1} parent=1 // pred_region
      %115 = vsyncadd [#allocation3], 0
      %s116 = sshll.u32 [#allocation2], 4
      %s117 = int_to_ptr.vmem [resolvable:$true] %s116
      %s118 = sshll.u32 %s2, 4
      %s119 = int_to_ptr.hbm [resolvable:$true] %s118
      %124 = dma.vmem_to_hbm [thread:$0]  %s117, 256, %s119, [#allocation3], 128, 128, 8
    $region17: #{tpu_custom_call.1} parent=1 // pred_fallthru
      _
    // Predicated region
    $region18: #{tpu_custom_call.1} parent=1 // pred_check
      _
    $region19: #{tpu_custom_call.1} parent=1 // pred_check_branch
      %126 = sbr.rel (0) target = $region21
    $region20: #{tpu_custom_call.1} parent=1 // pred_region
      %128 = dma.done [#allocation3], 256
    $region21: #{tpu_custom_call.1} parent=1 // pred_fallthru
      _
    %129 = vsyncpa [#allocation3], 1

</llo_original>
